<compile_context>
chip_gen: v7x
topology: tpu7x:2x2x1
jax: 0.10.0
libtpu: 0.0.40
codegen_flags: <defaults>
</compile_context>

<pallas_src>
import functools

import jax
import jax.numpy as jnp
from jax.experimental import pallas as pl
from jax.experimental.pallas import tpu as pltpu


def bertcnn_kernel(x_ref, wconv_ref, b1_ref, b2_ref, wfc_ref, bfc_ref, o_ref,
                   zpad_ref, *, kh1, kh2, oc):
    tb, t_len, d = x_ref.shape
    rows = tb * t_len
    khmax = max(kh1, kh2)
    ncols = wconv_ref.shape[1]                  # (kh1 + kh2) * OC

    # --- Fused conv matmul: every (conv, tap) pair shares the same LHS. ------
    xf = x_ref[...].reshape(rows, d).astype(jnp.bfloat16)
    z = jnp.dot(xf, wconv_ref[...], preferred_element_type=jnp.float32)

    # Stage the taps in a VMEM scratch padded with khmax-1 zero rows so the
    # temporal alignment of tap dh is a plain static sublane-shifted load.
    zpad_ref[pl.ds(0, rows), :] = z
    zpad_ref[pl.ds(rows, khmax - 1), :] = jnp.zeros((khmax - 1, ncols),
                                                    jnp.float32)

    def conv_relu_maxpool(tap0, kh, b_ref):
        t_out = t_len - kh + 1
        # acc[b*T + t] = sum_dh x[b, t+dh, :] @ W[dh]   (valid for t < t_out)
        acc = zpad_ref[pl.ds(0, rows), pl.ds(tap0 * oc, oc)]
        for dh in range(1, kh):                               # tiny static loop
            acc = acc + zpad_ref[pl.ds(dh, rows), pl.ds((tap0 + dh) * oc, oc)]
        act = jnp.maximum(acc + b_ref[...], 0.0)              # bias + ReLU, f32
        act = act.reshape(tb, t_len, oc)
        # Single-pass max over time.  Rows with t >= t_out carry partial-window
        # sums (including relu(bias) > 0) and MUST be masked; ReLU output >= 0,
        # so masking them to 0 leaves every per-batch max intact.
        t_idx = jax.lax.broadcasted_iota(jnp.int32, (tb, t_len, oc), 1)
        act = jnp.where(t_idx < t_out, act, 0.0)
        return jnp.max(act, axis=1)                           # (tb, OC)

    m1 = conv_relu_maxpool(0, kh1, b1_ref)
    m2 = conv_relu_maxpool(kh1, kh2, b2_ref)

    # --- FC: lane-concat the two pooled halves -> one K=2*OC MXU pass. -------
    m = jnp.concatenate([m1, m2], axis=1).astype(jnp.bfloat16)   # (tb, 2*OC)
    emb = jnp.dot(m, wfc_ref[...], preferred_element_type=jnp.float32)
    emb = jnp.maximum(emb + bfc_ref[...], 0.0)                   # bias + ReLU

    # F.normalize(p=2, dim=1), eps=1e-12:  x * rsqrt(max(||x||^2, 1e-24)).
    sumsq = jnp.sum(emb * emb, axis=1, keepdims=True)
    emb = emb * jax.lax.rsqrt(jnp.maximum(sumsq, 1e-24))

    o_ref[...] = emb.astype(o_ref.dtype)


def bertcnn_forward(x, w1, b1, w2, b2, wfc, bfc):
    """x: (B, T, D) f32 BERT features.
    w1/w2: (kh, D, OC) conv weights (== torch (OC, 1, kh, D) transposed),
    b1/b2: (1, OC), wfc: (2*OC, E), bfc: (1, E)."""
    B, T, D = x.shape
    kh1, kh2 = w1.shape[0], w2.shape[0]
    oc = w1.shape[-1]
    E = wfc.shape[1]
    n_taps = kh1 + kh2
    khmax = max(kh1, kh2)

    # All (conv, dh) taps stacked along the RHS column axis -> a single MXU call
    # with N = (kh1 + kh2) * OC.  At real BERT width (D = 768) K = D is already
    # lane-dense, so no contraction padding is required.
    wconv = jnp.concatenate(
        [jnp.transpose(w1, (1, 0, 2)).reshape(D, kh1 * oc),
         jnp.transpose(w2, (1, 0, 2)).reshape(D, kh2 * oc)],
        axis=1).astype(jnp.bfloat16)                          # (D, n_taps*OC)
    wfc_b = wfc.astype(jnp.bfloat16)                          # (2*OC, E)

    # Batch tiling: the "parallel" grid axis lets v7x's two TensorCores split B.
    tb = 8 if B % 8 == 0 else B
    grid = (B // tb,)
    rows = tb * T

    kernel = functools.partial(bertcnn_kernel, kh1=kh1, kh2=kh2, oc=oc)
    return pl.pallas_call(
        kernel,
        out_shape=jax.ShapeDtypeStruct((B, E), jnp.float32),
        grid_spec=pltpu.PrefetchScalarGridSpec(
            num_scalar_prefetch=0,
            grid=grid,
            in_specs=[
                pl.BlockSpec((tb, T, D), lambda i: (i, 0, 0)),      # x batch tile
                pl.BlockSpec((D, n_taps * oc), lambda i: (0, 0)),   # fused conv W
                pl.BlockSpec((1, oc), lambda i: (0, 0)),            # conv1 bias
                pl.BlockSpec((1, oc), lambda i: (0, 0)),            # conv2 bias
                pl.BlockSpec((2 * oc, E), lambda i: (0, 0)),        # FC weight
                pl.BlockSpec((1, E), lambda i: (0, 0)),             # FC bias
            ],
            out_specs=pl.BlockSpec((tb, E), lambda i: (i, 0)),
            scratch_shapes=[
                pltpu.VMEM((rows + khmax - 1, n_taps * oc), jnp.float32),
            ],
        ),
        compiler_params=pltpu.CompilerParams(
            dimension_semantics=("parallel",),
            vmem_limit_bytes=32 * 1024 * 1024),
    )(x, wconv, b1, b2, wfc_b, bfc)


def bertcnn_reference(x, w1, b1, w2, b2, wfc, bfc):
    """Pure-JAX f32 reference mirroring the PyTorch forward (eval mode)."""
    def block(w, b):
        kh = w.shape[0]
        t_out = x.shape[1] - kh + 1
        acc = sum(jnp.einsum("btd,do->bto", x[:, dh:dh + t_out, :], w[dh])
                  for dh in range(kh))
        act = jnp.maximum(acc + b, 0.0)
        return jnp.max(act, axis=1)

    all_out = jnp.concatenate([block(w1, b1), block(w2, b2)], axis=1)
    emb = jnp.maximum(all_out @ wfc + bfc, 0.0)
    norm = jnp.sqrt(jnp.sum(emb * emb, axis=1, keepdims=True))
    return emb / jnp.maximum(norm, 1e-12)


if __name__ == "__main__":
    # Small shapes consistent with the module: input_dim=16, seq_len=8,
    # out_channels=128, embd_size=128, kernel_heights=[3, 5], batch=2.
    B, T, D = 2, 8, 16
    OC, E = 128, 128
    KH1, KH2 = 3, 5

    key = jax.random.PRNGKey(0)
    kx, k1, kb1, k2, kb2, kf, kbf = jax.random.split(key, 7)

    x = jax.random.normal(kx, (B, T, D), jnp.float32)
    # Conv weights generated directly in (kh, D, OC) layout
    # (equivalent to torch weight (OC, 1, kh, D) transposed).
    w1 = jax.random.normal(k1, (KH1, D, OC), jnp.float32) * 0.1
    b1 = jax.random.normal(kb1, (1, OC), jnp.float32) * 0.1
    w2 = jax.random.normal(k2, (KH2, D, OC), jnp.float32) * 0.1
    b2 = jax.random.normal(kb2, (1, OC), jnp.float32) * 0.1
    wfc = jax.random.normal(kf, (2 * OC, E), jnp.float32) * 0.05
    bfc = jax.random.normal(kbf, (1, E), jnp.float32) * 0.05

    out = jax.block_until_ready(bertcnn_forward(x, w1, b1, w2, b2, wfc, bfc))
    ref = bertcnn_reference(x, w1, b1, w2, b2, wfc, bfc)

    assert out.shape == (B, E)
    # bf16 MXU operands (f32 accumulation) -> compare vs f32 ref with loose tol.
    assert jnp.allclose(out, ref, atol=2e-2, rtol=2e-2), "mismatch vs reference"

    print("KERNEL_OK")
</pallas_src>

<mosaic_0001>
module attributes {stable_mosaic.version = 11 : i64} {
  func.func @bertcnn_kernel(%arg0: i32, %arg1: memref<2x8x16xf32, #tpu.memory_space<vmem>>, %arg2: memref<16x1024xbf16, #tpu.memory_space<vmem>>, %arg3: memref<1x128xf32, #tpu.memory_space<vmem>>, %arg4: memref<1x128xf32, #tpu.memory_space<vmem>>, %arg5: memref<256x128xbf16, #tpu.memory_space<vmem>>, %arg6: memref<1x128xf32, #tpu.memory_space<vmem>>, %arg7: memref<2x128xf32, #tpu.memory_space<vmem>>, %arg8: memref<20x1024xf32, #tpu.memory_space<vmem>>) attributes {dimension_semantics = [#tpu.dimension_semantics<parallel>], iteration_bounds = array<i64: 1>, scalar_prefetch = 0 : i64, scratch_operands = 1 : i64, tpu.core_type = #tpu.core_type<tc>, window_params = [{transform_indices = @transform_0, window_bounds = array<i64: 2, 8, 16>}, {pipeline_mode = #tpu.pipeline_mode<synchronous>, transform_indices = @transform_1, window_bounds = array<i64: 16, 1024>}, {pipeline_mode = #tpu.pipeline_mode<synchronous>, transform_indices = @transform_2, window_bounds = array<i64: 1, 128>}, {pipeline_mode = #tpu.pipeline_mode<synchronous>, transform_indices = @transform_3, window_bounds = array<i64: 1, 128>}, {pipeline_mode = #tpu.pipeline_mode<synchronous>, transform_indices = @transform_4, window_bounds = array<i64: 256, 128>}, {pipeline_mode = #tpu.pipeline_mode<synchronous>, transform_indices = @transform_5, window_bounds = array<i64: 1, 128>}, {transform_indices = @transform_6, window_bounds = array<i64: 2, 128>}]} {
    %c0 = arith.constant 0 : index
    %c0_0 = arith.constant 0 : index
    %c0_1 = arith.constant 0 : index
    %0 = vector.load %arg1[%c0, %c0_0, %c0_1] : memref<2x8x16xf32, #tpu.memory_space<vmem>>, vector<2x8x16xf32>
    %1 = vector.shape_cast %0 : vector<2x8x16xf32> to vector<16x16xf32>
    %2 = arith.truncf %1 : vector<16x16xf32> to vector<16x16xbf16>
    %c0_2 = arith.constant 0 : index
    %c0_3 = arith.constant 0 : index
    %3 = vector.load %arg2[%c0_2, %c0_3] : memref<16x1024xbf16, #tpu.memory_space<vmem>>, vector<16x1024xbf16>
    %cst = arith.constant dense<0.000000e+00> : vector<16x1024xf32>
    %4 = tpu.matmul %2, %3, %cst {dimension_numbers = #tpu.dot_dimension_numbers<[1], [0], [0], [1], [0, 0, 1, 1], [], []>} : vector<16x16xbf16>, vector<16x1024xbf16>, vector<16x1024xf32> -> vector<16x1024xf32>
    %c0_4 = arith.constant 0 : index
    %c0_5 = arith.constant 0 : index
    %5 = vector.load %arg8[%c0_4, %c0_5] : memref<20x1024xf32, #tpu.memory_space<vmem>>, vector<16x1024xf32>
    tpu.vector_store %arg8[%c0_4, %c0_5], %4 {strides = array<i32>} : memref<20x1024xf32, #tpu.memory_space<vmem>>, vector<16x1024xf32>,
    %cst_6 = arith.constant 0.000000e+00 : f32
    %6 = vector.broadcast %cst_6 : f32 to vector<4x1024xf32>
    %c16 = arith.constant 16 : index
    %c0_7 = arith.constant 0 : index
    %7 = vector.load %arg8[%c16, %c0_7] : memref<20x1024xf32, #tpu.memory_space<vmem>>, vector<4x1024xf32>
    tpu.vector_store %arg8[%c16, %c0_7], %6 {strides = array<i32>} : memref<20x1024xf32, #tpu.memory_space<vmem>>, vector<4x1024xf32>,
    %c0_8 = arith.constant 0 : index
    %c0_9 = arith.constant 0 : index
    %8 = vector.load %arg8[%c0_8, %c0_9] : memref<20x1024xf32, #tpu.memory_space<vmem>>, vector<16x128xf32>
    %c1 = arith.constant 1 : index
    %c128 = arith.constant 128 : index
    %9 = vector.load %arg8[%c1, %c128] : memref<20x1024xf32, #tpu.memory_space<vmem>>, vector<16x128xf32>
    %10 = arith.addf %8, %9 : vector<16x128xf32>
    %c2 = arith.constant 2 : index
    %c256 = arith.constant 256 : index
    %11 = vector.load %arg8[%c2, %c256] : memref<20x1024xf32, #tpu.memory_space<vmem>>, vector<16x128xf32>
    %12 = arith.addf %10, %11 : vector<16x128xf32>
    %c0_10 = arith.constant 0 : index
    %c0_11 = arith.constant 0 : index
    %13 = vector.load %arg3[%c0_10, %c0_11] : memref<1x128xf32, #tpu.memory_space<vmem>>, vector<1x128xf32>
    %14 = vector.broadcast %13 : vector<1x128xf32> to vector<16x128xf32>
    %15 = arith.addf %12, %14 : vector<16x128xf32>
    %cst_12 = arith.constant 0.000000e+00 : f32
    %16 = vector.broadcast %cst_12 : f32 to vector<16x128xf32>
    %17 = arith.maximumf %15, %16 : vector<16x128xf32>
    %18 = vector.shape_cast %17 : vector<16x128xf32> to vector<2x8x128xf32>
    %19 = tpu.iota {dimensions = array<i32: 1>} : vector<2x8x128xi32>
    %c6_i32 = arith.constant 6 : i32
    %20 = vector.broadcast %c6_i32 : i32 to vector<2x8x128xi32>
    %21 = arith.cmpi slt, %19, %20 : vector<2x8x128xi32>
    %cst_13 = arith.constant 0.000000e+00 : f32
    %22 = vector.broadcast %cst_13 : f32 to vector<2x8x128xf32>
    %23 = arith.select %21, %18, %22 : vector<2x8x128xi1>, vector<2x8x128xf32>
    %cst_14 = arith.constant dense<0xFF800000> : vector<2x128xf32>
    %24 = vector.multi_reduction <maximumf>, %23, %cst_14 [1] : vector<2x8x128xf32> to vector<2x128xf32>
    %c0_15 = arith.constant 0 : index
    %c384 = arith.constant 384 : index
    %25 = vector.load %arg8[%c0_15, %c384] : memref<20x1024xf32, #tpu.memory_space<vmem>>, vector<16x128xf32>
    %c1_16 = arith.constant 1 : index
    %c512 = arith.constant 512 : index
    %26 = vector.load %arg8[%c1_16, %c512] : memref<20x1024xf32, #tpu.memory_space<vmem>>, vector<16x128xf32>
    %27 = arith.addf %25, %26 : vector<16x128xf32>
    %c2_17 = arith.constant 2 : index
    %c640 = arith.constant 640 : index
    %28 = vector.load %arg8[%c2_17, %c640] : memref<20x1024xf32, #tpu.memory_space<vmem>>, vector<16x128xf32>
    %29 = arith.addf %27, %28 : vector<16x128xf32>
    %c3 = arith.constant 3 : index
    %c768 = arith.constant 768 : index
    %30 = vector.load %arg8[%c3, %c768] : memref<20x1024xf32, #tpu.memory_space<vmem>>, vector<16x128xf32>
    %31 = arith.addf %29, %30 : vector<16x128xf32>
    %c4 = arith.constant 4 : index
    %c896 = arith.constant 896 : index
    %32 = vector.load %arg8[%c4, %c896] : memref<20x1024xf32, #tpu.memory_space<vmem>>, vector<16x128xf32>
    %33 = arith.addf %31, %32 : vector<16x128xf32>
    %c0_18 = arith.constant 0 : index
    %c0_19 = arith.constant 0 : index
    %34 = vector.load %arg4[%c0_18, %c0_19] : memref<1x128xf32, #tpu.memory_space<vmem>>, vector<1x128xf32>
    %35 = vector.broadcast %34 : vector<1x128xf32> to vector<16x128xf32>
    %36 = arith.addf %33, %35 : vector<16x128xf32>
    %cst_20 = arith.constant 0.000000e+00 : f32
    %37 = vector.broadcast %cst_20 : f32 to vector<16x128xf32>
    %38 = arith.maximumf %36, %37 : vector<16x128xf32>
    %39 = vector.shape_cast %38 : vector<16x128xf32> to vector<2x8x128xf32>
    %40 = tpu.iota {dimensions = array<i32: 1>} : vector<2x8x128xi32>
    %c4_i32 = arith.constant 4 : i32
    %41 = vector.broadcast %c4_i32 : i32 to vector<2x8x128xi32>
    %42 = arith.cmpi slt, %40, %41 : vector<2x8x128xi32>
    %cst_21 = arith.constant 0.000000e+00 : f32
    %43 = vector.broadcast %cst_21 : f32 to vector<2x8x128xf32>
    %44 = arith.select %42, %39, %43 : vector<2x8x128xi1>, vector<2x8x128xf32>
    %cst_22 = arith.constant dense<0xFF800000> : vector<2x128xf32>
    %45 = vector.multi_reduction <maximumf>, %44, %cst_22 [1] : vector<2x8x128xf32> to vector<2x128xf32>
    %46 = tpu.concatenate %24, %45 in 1 : vector<2x128xf32>, vector<2x128xf32> -> vector<2x256xf32>
    %47 = arith.truncf %46 : vector<2x256xf32> to vector<2x256xbf16>
    %c0_23 = arith.constant 0 : index
    %c0_24 = arith.constant 0 : index
    %48 = vector.load %arg5[%c0_23, %c0_24] : memref<256x128xbf16, #tpu.memory_space<vmem>>, vector<256x128xbf16>
    %cst_25 = arith.constant dense<0.000000e+00> : vector<2x128xf32>
    %49 = tpu.matmul %47, %48, %cst_25 {dimension_numbers = #tpu.dot_dimension_numbers<[1], [0], [0], [1], [0, 0, 1, 1], [], []>} : vector<2x256xbf16>, vector<256x128xbf16>, vector<2x128xf32> -> vector<2x128xf32>
    %c0_26 = arith.constant 0 : index
    %c0_27 = arith.constant 0 : index
    %50 = vector.load %arg6[%c0_26, %c0_27] : memref<1x128xf32, #tpu.memory_space<vmem>>, vector<1x128xf32>
    %51 = vector.broadcast %50 : vector<1x128xf32> to vector<2x128xf32>
    %52 = arith.addf %49, %51 : vector<2x128xf32>
    %cst_28 = arith.constant 0.000000e+00 : f32
    %53 = vector.broadcast %cst_28 : f32 to vector<2x128xf32>
    %54 = arith.maximumf %52, %53 : vector<2x128xf32>
    %55 = arith.mulf %54, %54 : vector<2x128xf32>
    %cst_29 = arith.constant dense<0.000000e+00> : vector<2xf32>
    %56 = vector.multi_reduction <add>, %55, %cst_29 [1] : vector<2x128xf32> to vector<2xf32>
    %57 = vector.shape_cast %56 : vector<2xf32> to vector<2x1xf32>
    %cst_30 = arith.constant 1.000000e-24 : f32
    %58 = vector.broadcast %cst_30 : f32 to vector<2x1xf32>
    %59 = arith.maximumf %57, %58 : vector<2x1xf32>
    %60 = math.rsqrt %59 : vector<2x1xf32>
    %61 = vector.broadcast %60 : vector<2x1xf32> to vector<2x128xf32>
    %62 = arith.mulf %54, %61 : vector<2x128xf32>
    %c0_31 = arith.constant 0 : index
    %c0_32 = arith.constant 0 : index
    %63 = vector.load %arg7[%c0_31, %c0_32] : memref<2x128xf32, #tpu.memory_space<vmem>>, vector<2x128xf32>
    tpu.vector_store %arg7[%c0_31, %c0_32], %62 {strides = array<i32>} : memref<2x128xf32, #tpu.memory_space<vmem>>, vector<2x128xf32>,
    return
  }
  func.func @transform_0(%arg0: i32) -> (i32, i32, i32) {
    %c0_i32 = arith.constant 0 : i32
    %c0_i32_0 = arith.constant 0 : i32
    %c0_i32_1 = arith.constant 0 : i32
    return %arg0, %c0_i32, %c0_i32_0 : i32, i32, i32
  }
  func.func @transform_1(%arg0: i32) -> (i32, i32) {
    %c0_i32 = arith.constant 0 : i32
    %c0_i32_0 = arith.constant 0 : i32
    %c0_i32_1 = arith.constant 0 : i32
    return %c0_i32, %c0_i32_0 : i32, i32
  }
  func.func @transform_2(%arg0: i32) -> (i32, i32) {
    %c0_i32 = arith.constant 0 : i32
    %c0_i32_0 = arith.constant 0 : i32
    %c0_i32_1 = arith.constant 0 : i32
    return %c0_i32, %c0_i32_0 : i32, i32
  }
  func.func @transform_3(%arg0: i32) -> (i32, i32) {
    %c0_i32 = arith.constant 0 : i32
    %c0_i32_0 = arith.constant 0 : i32
    %c0_i32_1 = arith.constant 0 : i32
    return %c0_i32, %c0_i32_0 : i32, i32
  }
  func.func @transform_4(%arg0: i32) -> (i32, i32) {
    %c0_i32 = arith.constant 0 : i32
    %c0_i32_0 = arith.constant 0 : i32
    %c0_i32_1 = arith.constant 0 : i32
    return %c0_i32, %c0_i32_0 : i32, i32
  }
  func.func @transform_5(%arg0: i32) -> (i32, i32) {
    %c0_i32 = arith.constant 0 : i32
    %c0_i32_0 = arith.constant 0 : i32
    %c0_i32_1 = arith.constant 0 : i32
    return %c0_i32, %c0_i32_0 : i32, i32
  }
  func.func @transform_6(%arg0: i32) -> (i32, i32) {
    %c0_i32 = arith.constant 0 : i32
    %c0_i32_0 = arith.constant 0 : i32
    return %arg0, %c0_i32 : i32, i32
  }
}

</mosaic_0001>

<llo_original>
// kernel: tpu_custom_call.1
$region0: #{tpu_custom_call.1}
  #allocation0 [shape = 'u32[]', space=smem, size = 0x4, offset = 0x4, fixed_abs, tag = 'smem constant byte address 0x4 - core index']
  #allocation1 [shape = 'u32[144,128]{1,0:T(1,128)}', space=vmem, size = 0x12000, scoped, tag = 'internal scratch']
  #allocation2 [shape = 'f32[20,1024]{1,0:T(8,128)}', space=vmem, size = 0x18000, scoped, tag = 'scratch operand']
  %s0 = inlined_call_operand.hbm [shape: f32[2,8,16], index: 0, kind: input, shape index: {}]
  %s1 = inlined_call_operand.hbm [shape: bf16[16,1024], index: 1, kind: input, shape index: {}]
  %s2 = inlined_call_operand.vmem [shape: f32[1,128], index: 2, kind: input, shape index: {}]
  %s3 = inlined_call_operand.vmem [shape: f32[1,128], index: 3, kind: input, shape index: {}]
  %s4 = inlined_call_operand.hbm [shape: bf16[256,128], index: 4, kind: input, shape index: {}]
  %s5 = inlined_call_operand.vmem [shape: f32[1,128], index: 5, kind: input, shape index: {}]
  %s6 = inlined_call_operand.hbm [shape: f32[2,128], index: 6, kind: output, shape index: {}]
  %s7 = sld [smem:[#allocation0]]
  $region46: #{tpu_custom_call.1} parent=0
    _
  %s9 = ssub.s32 1, %s7
  %s10 = scalar_select 0, %s9, %s7
  $region1: #{tpu_custom_call.1} parent=0
    #allocation3 [shape = 'u8[8192]{0}', space=vmem, size = 0x2000, scoped, tag = 'input window, operand 0, single buffered']
    #allocation4 [shape = 's32[1]{0}', space=sflag, size = 0x4, scoped, tag = 'scoped memory for tpu_custom_call.1']
    #allocation5 [shape = 's32[1]{0}', space=sflag, size = 0x4, scoped, tag = 'scoped memory for tpu_custom_call.1']
    #allocation6 [shape = 'u8[32768]{0}', space=vmem, size = 0x8000, scoped, tag = 'input window, operand 1, single buffered']
    #allocation7 [shape = 's32[1]{0}', space=sflag, size = 0x4, scoped, tag = 'scoped memory for tpu_custom_call.1']
    #allocation8 [shape = 'u8[65536]{0}', space=vmem, size = 0x10000, scoped, tag = 'input window, operand 4, single buffered']
    #allocation9 [shape = 'u8[1024]{0}', space=vmem, size = 0x400, scoped, tag = 'output window, operand 0, single buffered']
    %11 = vsyncpa [#allocation4], 0
    %12 = vsyncpa [#allocation7], 0
    %13 = vsyncpa [#allocation5], 0
    // Predicated region
    $region2: #{tpu_custom_call.1} parent=1 // pred_check
      _
    $region3: #{tpu_custom_call.1} parent=1 // pred_check_branch
      %15 = sbr.rel (0) target = $region5
    $region4: #{tpu_custom_call.1} parent=1 // pred_region
      %s17 = ssub.s32 256, 256
      %18 = vsyncadd [#allocation4], %s17
      %s19 = sshll.u32 [#allocation3], 4
      %s20 = int_to_ptr.vmem [resolvable:$true] %s19
      %25 = dma.hbm_to_vmem [thread:$0]  %s0, 256, %s20, [#allocation4], 128, 128, 8
    $region5: #{tpu_custom_call.1} parent=1 // pred_fallthru
      _
    // Predicated region
    $region6: #{tpu_custom_call.1} parent=1 // pred_check
      _
    $region7: #{tpu_custom_call.1} parent=1 // pred_check_branch
      %27 = sbr.rel (0) target = $region9
    $region8: #{tpu_custom_call.1} parent=1 // pred_region
      %s29 = ssub.s32 1024, 1024
      %30 = vsyncadd [#allocation7], %s29
      %s31 = sshll.u32 [#allocation6], 4
      %s32 = int_to_ptr.vmem [resolvable:$true] %s31
      %37 = dma.hbm_to_vmem [thread:$0]  %s1, 1024, %s32, [#allocation7], 512, 512, 32
    $region9: #{tpu_custom_call.1} parent=1 // pred_fallthru
      _
    // Predicated region
    $region10: #{tpu_custom_call.1} parent=1 // pred_check
      _
    $region11: #{tpu_custom_call.1} parent=1 // pred_check_branch
      %39 = sbr.rel (0) target = $region13
    $region12: #{tpu_custom_call.1} parent=1 // pred_region
      _
    $region13: #{tpu_custom_call.1} parent=1 // pred_fallthru
      _
    // Predicated region
    $region14: #{tpu_custom_call.1} parent=1 // pred_check
      _
    $region15: #{tpu_custom_call.1} parent=1 // pred_check_branch
      %41 = sbr.rel (0) target = $region17
    $region16: #{tpu_custom_call.1} parent=1 // pred_region
      _
    $region17: #{tpu_custom_call.1} parent=1 // pred_fallthru
      _
    // Predicated region
    $region18: #{tpu_custom_call.1} parent=1 // pred_check
      _
    $region19: #{tpu_custom_call.1} parent=1 // pred_check_branch
      %43 = sbr.rel (0) target = $region21
    $region20: #{tpu_custom_call.1} parent=1 // pred_region
      %s45 = ssub.s32 2048, 2048
      %46 = vsyncadd [#allocation7], %s45
      %s47 = sshll.u32 [#allocation8], 4
      %s48 = int_to_ptr.vmem [resolvable:$true] %s47
      %53 = dma.hbm_to_vmem [thread:$0]  %s4, 2048, %s48, [#allocation7], 64, 64, 4
    $region21: #{tpu_custom_call.1} parent=1 // pred_fallthru
      _
    // Predicated region
    $region22: #{tpu_custom_call.1} parent=1 // pred_check
      _
    $region23: #{tpu_custom_call.1} parent=1 // pred_check_branch
      %55 = sbr.rel (0) target = $region25
    $region24: #{tpu_custom_call.1} parent=1 // pred_region
      _
    $region25: #{tpu_custom_call.1} parent=1 // pred_fallthru
      _
    // Predicated region
    $region26: #{tpu_custom_call.1} parent=1 // pred_check
      _
    $region27: #{tpu_custom_call.1} parent=1 // pred_check_branch
      %57 = sbr.rel (0) target = $region29
    $region28: #{tpu_custom_call.1} parent=1 // pred_region
      %58 = dma.done [#allocation4], 256
    $region29: #{tpu_custom_call.1} parent=1 // pred_fallthru
      _
    // Predicated region
    $region30: #{tpu_custom_call.1} parent=1 // pred_check
      _
    $region31: #{tpu_custom_call.1} parent=1 // pred_check_branch
      %60 = sbr.rel (0) target = $region33
    $region32: #{tpu_custom_call.1} parent=1 // pred_region
      %61 = dma.done [#allocation7], 1024
    $region33: #{tpu_custom_call.1} parent=1 // pred_fallthru
      _
    // Predicated region
    $region34: #{tpu_custom_call.1} parent=1 // pred_check
      _
    $region35: #{tpu_custom_call.1} parent=1 // pred_check_branch
      %63 = sbr.rel (0) target = $region37
    $region36: #{tpu_custom_call.1} parent=1 // pred_region
      %64 = dma.done [#allocation7], 2048
    $region37: #{tpu_custom_call.1} parent=1 // pred_fallthru
      _
    %v66 = vld [vmem:[#allocation3] sm:$0xff]
    %v67 = vld [vmem:[#allocation3 + $0x8] sm:$0xff]
    %v68 = vpack.c.bf16 %v67, %v66
    %v69 = vld [vmem:[#allocation6] sm:$0xff]
    %v70 = vld [vmem:[#allocation6 + $0x8] sm:$0xff]
    %v71 = vld [vmem:[#allocation6 + $0x10] sm:$0xff]
    %v72 = vld [vmem:[#allocation6 + $0x18] sm:$0xff]
    %v73 = vld [vmem:[#allocation6 + $0x20] sm:$0xff]
    %v74 = vld [vmem:[#allocation6 + $0x28] sm:$0xff]
    %v75 = vld [vmem:[#allocation6 + $0x30] sm:$0xff]
    %v76 = vld [vmem:[#allocation6 + $0x38] sm:$0xff]
    %v85 = vunpack.c.l.b16 %v69
    %v86 = vunpack.c.h.b16 %v69
    %v87 = vunpack.c.l.b16 %v70
    %v88 = vunpack.c.h.b16 %v70
    %v89 = vunpack.c.l.b16 %v71
    %v90 = vunpack.c.h.b16 %v71
    %v91 = vunpack.c.l.b16 %v72
    %v92 = vunpack.c.h.b16 %v72
    %v93 = vunpack.c.l.b16 %v73
    %v94 = vunpack.c.h.b16 %v73
    %v95 = vunpack.c.l.b16 %v74
    %v96 = vunpack.c.h.b16 %v74
    %v97 = vunpack.c.l.b16 %v75
    %v98 = vunpack.c.h.b16 %v75
    %v99 = vunpack.c.l.b16 %v76
    %v100 = vunpack.c.h.b16 %v76
    %v101 = vpack.c.b16 %v93, %v85
    %v102 = vpack.c.b16 %v94, %v86
    %v103 = vpack.c.b16 %v95, %v87
    %v104 = vpack.c.b16 %v96, %v88
    %v105 = vpack.c.b16 %v97, %v89
    %v106 = vpack.c.b16 %v98, %v90
    %v107 = vpack.c.b16 %v99, %v91
    %v108 = vpack.c.b16 %v100, %v92
    %vm117 = vcmask 130048
    %v119 = vsel %vm117, %v68, 0
    %121 = vmatprep.subr.bf16.mxu0 %v102
    %122 = vmatpush1.bf16.msra.mxu0 %v101
    %123 = vmatprep.subr.bf16.mxu0 0
    %124 = vmatpush1.bf16.msra.mxu0 0
    %125 = vmatprep.subr.bf16.mxu0 0
    %126 = vmatpush1.bf16.msra.mxu0 0
    %127 = vmatprep.subr.bf16.mxu0 0
    %128 = vmatpush1.bf16.msra.mxu0 0
    %129 = vmatprep.subr.bf16.mxu0 0
    %130 = vmatpush1.bf16.msra.mxu0 0
    %131 = vmatprep.subr.bf16.mxu0 0
    %132 = vmatpush1.bf16.msra.mxu0 0
    %133 = vmatprep.subr.bf16.mxu0 0
    %134 = vmatpush1.bf16.msra.mxu0 0
    %135 = vmatprep.subr.bf16.mxu0 0
    %136 = vmatpush1.bf16.msra.mxu0 0
    %137 = vmatprep.subr.bf16.mxu0 0
    %138 = vmatpush1.bf16.msra.mxu0 0
    %139 = vmatprep.subr.bf16.mxu0 0
    %140 = vmatpush1.bf16.msra.mxu0 0
    %141 = vmatprep.subr.bf16.mxu0 0
    %142 = vmatpush1.bf16.msra.mxu0 0
    %143 = vmatprep.subr.bf16.mxu0 0
    %144 = vmatpush1.bf16.msra.mxu0 0
    %145 = vmatprep.subr.bf16.mxu0 0
    %146 = vmatpush1.bf16.msra.mxu0 0
    %147 = vmatprep.subr.bf16.mxu0 0
    %148 = vmatpush1.bf16.msra.mxu0 0
    %149 = vmatprep.subr.bf16.mxu0 0
    %150 = vmatpush1.bf16.msra.mxu0 0
    %151 = vmatprep.subr.bf16.mxu0 0
    %152 = vmatpush1.bf16.msra.mxu0 0
    %153 = vmatprep.mubr.bf16.mxu0 0
    %154 = vmatmul.mubr.bf16.gmra.mrb[0].mxu0 %v119
    %v155 = vpop.f32.mrb[0].mxu0
    %v156 = vadd.f32 0.0, %v155
    %v157 = vpop.f32.mrb[0].mxu0
    %v158 = vadd.f32 0.0, %v157
    %v159 = vpop.f32.mrb[0].mxu0
    %v160 = vadd.f32 0.0, %v159
    %v161 = vpop.f32.mrb[0].mxu0
    %v162 = vadd.f32 0.0, %v161
    %163 = vdwg.mxu0
    %164 = vmatprep.subr.bf16.mxu0 %v104
    %165 = vmatpush1.bf16.msra.mxu0 %v103
    %166 = vmatprep.subr.bf16.mxu0 0
    %167 = vmatpush1.bf16.msra.mxu0 0
    %168 = vmatprep.subr.bf16.mxu0 0
    %169 = vmatpush1.bf16.msra.mxu0 0
    %170 = vmatprep.subr.bf16.mxu0 0
    %171 = vmatpush1.bf16.msra.mxu0 0
    %172 = vmatprep.subr.bf16.mxu0 0
    %173 = vmatpush1.bf16.msra.mxu0 0
    %174 = vmatprep.subr.bf16.mxu0 0
    %175 = vmatpush1.bf16.msra.mxu0 0
    %176 = vmatprep.subr.bf16.mxu0 0
    %177 = vmatpush1.bf16.msra.mxu0 0
    %178 = vmatprep.subr.bf16.mxu0 0
    %179 = vmatpush1.bf16.msra.mxu0 0
    %180 = vmatprep.subr.bf16.mxu0 0
    %181 = vmatpush1.bf16.msra.mxu0 0
    %182 = vmatprep.subr.bf16.mxu0 0
    %183 = vmatpush1.bf16.msra.mxu0 0
    %184 = vmatprep.subr.bf16.mxu0 0
    %185 = vmatpush1.bf16.msra.mxu0 0
    %186 = vmatprep.subr.bf16.mxu0 0
    %187 = vmatpush1.bf16.msra.mxu0 0
    %188 = vmatprep.subr.bf16.mxu0 0
    %189 = vmatpush1.bf16.msra.mxu0 0
    %190 = vmatprep.subr.bf16.mxu0 0
    %191 = vmatpush1.bf16.msra.mxu0 0
    %192 = vmatprep.subr.bf16.mxu0 0
    %193 = vmatpush1.bf16.msra.mxu0 0
    %194 = vmatprep.subr.bf16.mxu0 0
    %195 = vmatpush1.bf16.msra.mxu0 0
    %196 = vmatprep.mubr.bf16.mxu0 0
    %197 = vmatmul.mubr.bf16.gmra.mrb[0].mxu0 %v119
    %v198 = vpop.f32.mrb[0].mxu0
    %v199 = vadd.f32 0.0, %v198
    %v200 = vpop.f32.mrb[0].mxu0
    %v201 = vadd.f32 0.0, %v200
    %v202 = vpop.f32.mrb[0].mxu0
    %v203 = vadd.f32 0.0, %v202
    %v204 = vpop.f32.mrb[0].mxu0
    %v205 = vadd.f32 0.0, %v204
    %206 = vdwg.mxu0
    %207 = vmatprep.subr.bf16.mxu0 %v106
    %208 = vmatpush1.bf16.msra.mxu0 %v105
    %209 = vmatprep.subr.bf16.mxu0 0
    %210 = vmatpush1.bf16.msra.mxu0 0
    %211 = vmatprep.subr.bf16.mxu0 0
    %212 = vmatpush1.bf16.msra.mxu0 0
    %213 = vmatprep.subr.bf16.mxu0 0
    %214 = vmatpush1.bf16.msra.mxu0 0
    %215 = vmatprep.subr.bf16.mxu0 0
    %216 = vmatpush1.bf16.msra.mxu0 0
    %217 = vmatprep.subr.bf16.mxu0 0
    %218 = vmatpush1.bf16.msra.mxu0 0
    %219 = vmatprep.subr.bf16.mxu0 0
    %220 = vmatpush1.bf16.msra.mxu0 0
    %221 = vmatprep.subr.bf16.mxu0 0
    %222 = vmatpush1.bf16.msra.mxu0 0
    %223 = vmatprep.subr.bf16.mxu0 0
    %224 = vmatpush1.bf16.msra.mxu0 0
    %225 = vmatprep.subr.bf16.mxu0 0
    %226 = vmatpush1.bf16.msra.mxu0 0
    %227 = vmatprep.subr.bf16.mxu0 0
    %228 = vmatpush1.bf16.msra.mxu0 0
    %229 = vmatprep.subr.bf16.mxu0 0
    %230 = vmatpush1.bf16.msra.mxu0 0
    %231 = vmatprep.subr.bf16.mxu0 0
    %232 = vmatpush1.bf16.msra.mxu0 0
    %233 = vmatprep.subr.bf16.mxu0 0
    %234 = vmatpush1.bf16.msra.mxu0 0
    %235 = vmatprep.subr.bf16.mxu0 0
    %236 = vmatpush1.bf16.msra.mxu0 0
    %237 = vmatprep.subr.bf16.mxu0 0
    %238 = vmatpush1.bf16.msra.mxu0 0
    %239 = vmatprep.mubr.bf16.mxu0 0
    %240 = vmatmul.mubr.bf16.gmra.mrb[0].mxu0 %v119
    %v241 = vpop.f32.mrb[0].mxu0
    %v242 = vadd.f32 0.0, %v241
    %v243 = vpop.f32.mrb[0].mxu0
    %v244 = vadd.f32 0.0, %v243
    %v245 = vpop.f32.mrb[0].mxu0
    %v246 = vadd.f32 0.0, %v245
    %v247 = vpop.f32.mrb[0].mxu0
    %v248 = vadd.f32 0.0, %v247
    %249 = vdwg.mxu0
    %250 = vmatprep.subr.bf16.mxu0 %v108
    %251 = vmatpush1.bf16.msra.mxu0 %v107
    %252 = vmatprep.subr.bf16.mxu0 0
    %253 = vmatpush1.bf16.msra.mxu0 0
    %254 = vmatprep.subr.bf16.mxu0 0
    %255 = vmatpush1.bf16.msra.mxu0 0
    %256 = vmatprep.subr.bf16.mxu0 0
    %257 = vmatpush1.bf16.msra.mxu0 0
    %258 = vmatprep.subr.bf16.mxu0 0
    %259 = vmatpush1.bf16.msra.mxu0 0
    %260 = vmatprep.subr.bf16.mxu0 0
    %261 = vmatpush1.bf16.msra.mxu0 0
    %262 = vmatprep.subr.bf16.mxu0 0
    %263 = vmatpush1.bf16.msra.mxu0 0
    %264 = vmatprep.subr.bf16.mxu0 0
    %265 = vmatpush1.bf16.msra.mxu0 0
    %266 = vmatprep.subr.bf16.mxu0 0
    %267 = vmatpush1.bf16.msra.mxu0 0
    %268 = vmatprep.subr.bf16.mxu0 0
    %269 = vmatpush1.bf16.msra.mxu0 0
    %270 = vmatprep.subr.bf16.mxu0 0
    %271 = vmatpush1.bf16.msra.mxu0 0
    %272 = vmatprep.subr.bf16.mxu0 0
    %273 = vmatpush1.bf16.msra.mxu0 0
    %274 = vmatprep.subr.bf16.mxu0 0
    %275 = vmatpush1.bf16.msra.mxu0 0
    %276 = vmatprep.subr.bf16.mxu0 0
    %277 = vmatpush1.bf16.msra.mxu0 0
    %278 = vmatprep.subr.bf16.mxu0 0
    %279 = vmatpush1.bf16.msra.mxu0 0
    %280 = vmatprep.subr.bf16.mxu0 0
    %281 = vmatpush1.bf16.msra.mxu0 0
    %282 = vmatprep.mubr.bf16.mxu0 0
    %283 = vmatmul.mubr.bf16.gmra.mrb[0].mxu0 %v119
    %v284 = vpop.f32.mrb[0].mxu0
    %v285 = vadd.f32 0.0, %v284
    %v286 = vpop.f32.mrb[0].mxu0
    %v287 = vadd.f32 0.0, %v286
    %v288 = vpop.f32.mrb[0].mxu0
    %v289 = vadd.f32 0.0, %v288
    %v290 = vpop.f32.mrb[0].mxu0
    %v291 = vadd.f32 0.0, %v290
    %292 = vdwg.mxu0
    %293 = vst [vmem:[#allocation2] sm:$0xff] %v156
    %294 = vst [vmem:[#allocation2 + $0x8] sm:$0xff] %v158
    %295 = vst [vmem:[#allocation2 + $0x10] sm:$0xff] %v199
    %296 = vst [vmem:[#allocation2 + $0x18] sm:$0xff] %v201
    %297 = vst [vmem:[#allocation2 + $0x20] sm:$0xff] %v242
    %298 = vst [vmem:[#allocation2 + $0x28] sm:$0xff] %v244
    %299 = vst [vmem:[#allocation2 + $0x30] sm:$0xff] %v285
    %300 = vst [vmem:[#allocation2 + $0x38] sm:$0xff] %v287
    %301 = vst [vmem:[#allocation2 + $0x40] sm:$0xff] %v160
    %302 = vst [vmem:[#allocation2 + $0x48] sm:$0xff] %v162
    %303 = vst [vmem:[#allocation2 + $0x50] sm:$0xff] %v203
    %304 = vst [vmem:[#allocation2 + $0x58] sm:$0xff] %v205
    %305 = vst [vmem:[#allocation2 + $0x60] sm:$0xff] %v246
    %306 = vst [vmem:[#allocation2 + $0x68] sm:$0xff] %v248
    %307 = vst [vmem:[#allocation2 + $0x70] sm:$0xff] %v289
    %308 = vst [vmem:[#allocation2 + $0x78] sm:$0xff] %v291
    %309 = vst [vmem:[#allocation2 + $0x80] sm:$0xf] 0.0
    %310 = vst [vmem:[#allocation2 + $0x88] sm:$0xf] 0.0
    %311 = vst [vmem:[#allocation2 + $0x90] sm:$0xf] 0.0
    %312 = vst [vmem:[#allocation2 + $0x98] sm:$0xf] 0.0
    %313 = vst [vmem:[#allocation2 + $0xa0] sm:$0xf] 0.0
    %314 = vst [vmem:[#allocation2 + $0xa8] sm:$0xf] 0.0
    %315 = vst [vmem:[#allocation2 + $0xb0] sm:$0xf] 0.0
    %316 = vst [vmem:[#allocation2 + $0xb8] sm:$0xf] 0.0
    %v317 = vld [vmem:[#allocation2] sm:$0xff]
    %v318 = vld [vmem:[#allocation2 + $0x40] sm:$0xff]
    %v319 = vld [vmem:[#allocation2 + $0x8] sm:$0xfe]
    %v320 = vld [vmem:[#allocation2 + $0x48] sm:$0xff]
    %v321 = vld [vmem:[#allocation2 + $0x88] sm:$0x1]
    %vm325 = vcmask 1046528
    %v326 = vrot.slane %v319, 1
    %v327 = vrot.slane %v320, 1
    %v328 = vsel %vm325, %v326, %v327
    %v329 = vrot.slane %v321, 1
    %v330 = vsel %vm325, %v327, %v329
    %v333 = vadd.f32 %v317, %v328
    %v334 = vadd.f32 %v318, %v330
    %v335 = vld [vmem:[#allocation2 + $0x10] sm:$0xfc]
    %v336 = vld [vmem:[#allocation2 + $0x50] sm:$0xff]
    %v337 = vld [vmem:[#allocation2 + $0x90] sm:$0x3]
    %vm341 = vcmask 1045504
    %v342 = vrot.slane %v335, 2
    %v343 = vrot.slane %v336, 2
    %v344 = vsel %vm341, %v342, %v343
    %v345 = vrot.slane %v337, 2
    %v346 = vsel %vm341, %v343, %v345
    %v349 = vadd.f32 %v333, %v344
    %v350 = vadd.f32 %v334, %v346
    %v351 = vld [vmem:[%s2] sm:$0x1]
    %v353 = vlaneseq
    %v354 = vshrl.u32 %v353, 7
    %v355 = vsub.s32 0, %v354
    %v356 = vrot.slane %v351, %v355
    %v358 = vadd.f32 %v349, %v356
    %v359 = vadd.f32 %v350, %v356
    %v360 = vmax.f32 %v358, 0.0
    %v361 = vmax.f32 %v359, 0.0
    %v362 = vlaneseq
    %v363 = vshrl.u32 %v362, 7
    %vm364 = vcmp.lt.s32.totalorder %v363, 6
    %v365 = vsel %vm364, %v360, 0.0
    %v366 = vsel %vm364, %v361, 0.0
    %v367 = vrot.slane %v365, 4
    %v368 = vmax.f32 %v365, %v367
    %v369 = vrot.slane %v368, 2
    %v370 = vmax.f32 %v368, %v369
    %v371 = vrot.slane %v370, 1
    %v372 = vmax.f32 %v370, %v371
    %v373 = vrot.slane %v366, 4
    %v374 = vmax.f32 %v366, %v373
    %v375 = vrot.slane %v374, 2
    %v376 = vmax.f32 %v374, %v375
    %v377 = vrot.slane %v376, 1
    %v378 = vmax.f32 %v376, %v377
    %v379 = vld [vmem:[#allocation2 + $0x18] sm:$0xff]
    %v380 = vld [vmem:[#allocation2 + $0x58] sm:$0xff]
    %v381 = vld [vmem:[#allocation2 + $0x20] sm:$0xfe]
    %v382 = vld [vmem:[#allocation2 + $0x60] sm:$0xff]
    %v383 = vld [vmem:[#allocation2 + $0xa0] sm:$0x1]
    %v387 = vrot.slane %v381, 1
    %v388 = vrot.slane %v382, 1
    %v389 = vsel %vm325, %v387, %v388
    %v390 = vrot.slane %v383, 1
    %v391 = vsel %vm325, %v388, %v390
    %v394 = vadd.f32 %v379, %v389
    %v395 = vadd.f32 %v380, %v391
    %v396 = vld [vmem:[#allocation2 + $0x28] sm:$0xfc]
    %v397 = vld [vmem:[#allocation2 + $0x68] sm:$0xff]
    %v398 = vld [vmem:[#allocation2 + $0xa8] sm:$0x3]
    %v402 = vrot.slane %v396, 2
    %v403 = vrot.slane %v397, 2
    %v404 = vsel %vm341, %v402, %v403
    %v405 = vrot.slane %v398, 2
    %v406 = vsel %vm341, %v403, %v405
    %v409 = vadd.f32 %v394, %v404
    %v410 = vadd.f32 %v395, %v406
    %v411 = vld [vmem:[#allocation2 + $0x30] sm:$0xf8]
    %v412 = vld [vmem:[#allocation2 + $0x70] sm:$0xff]
    %v413 = vld [vmem:[#allocation2 + $0xb0] sm:$0x7]
    %vm417 = vcmask 1044480
    %v418 = vrot.slane %v411, 3
    %v419 = vrot.slane %v412, 3
    %v420 = vsel %vm417, %v418, %v419
    %v421 = vrot.slane %v413, 3
    %v422 = vsel %vm417, %v419, %v421
    %v425 = vadd.f32 %v409, %v420
    %v426 = vadd.f32 %v410, %v422
    %v427 = vld [vmem:[#allocation2 + $0x38] sm:$0xf0]
    %v428 = vld [vmem:[#allocation2 + $0x78] sm:$0xff]
    %v429 = vld [vmem:[#allocation2 + $0xb8] sm:$0xf]
    %vm433 = vcmask 1043456
    %v434 = vrot.slane %v427, 4
    %v435 = vrot.slane %v428, 4
    %v436 = vsel %vm433, %v434, %v435
    %v437 = vrot.slane %v429, 4
    %v438 = vsel %vm433, %v435, %v437
    %v441 = vadd.f32 %v425, %v436
    %v442 = vadd.f32 %v426, %v438
    %v443 = vld [vmem:[%s3] sm:$0x1]
    %v445 = vlaneseq
    %v446 = vshrl.u32 %v445, 7
    %v447 = vsub.s32 0, %v446
    %v448 = vrot.slane %v443, %v447
    %v450 = vadd.f32 %v441, %v448
    %v451 = vadd.f32 %v442, %v448
    %v452 = vmax.f32 %v450, 0.0
    %v453 = vmax.f32 %v451, 0.0
    %vm454 = vcmp.lt.s32.totalorder %v363, 4
    %v455 = vsel %vm454, %v452, 0.0
    %v456 = vsel %vm454, %v453, 0.0
    %v457 = vrot.slane %v455, 4
    %v458 = vmax.f32 %v455, %v457
    %v459 = vrot.slane %v458, 2
    %v460 = vmax.f32 %v458, %v459
    %v461 = vrot.slane %v460, 1
    %v462 = vmax.f32 %v460, %v461
    %v463 = vrot.slane %v456, 4
    %v464 = vmax.f32 %v456, %v463
    %v465 = vrot.slane %v464, 2
    %v466 = vmax.f32 %v464, %v465
    %v467 = vrot.slane %v466, 1
    %v468 = vmax.f32 %v466, %v467
    %vm471 = vcmask 1041409
    %v472 = vsel %vm471, %v378, %v372
    %v476 = vsel %vm471, %v468, %v462
    %v478 = vpack.c.bf16 %v472, %v472
    %v479 = vpack.c.bf16 %v476, %v476
    %v480 = vld [vmem:[#allocation8] sm:$0xf]
    %v481 = vld [vmem:[#allocation8 + $0x4] sm:$0xf]
    %v482 = vld [vmem:[#allocation8 + $0x8] sm:$0xf]
    %v483 = vld [vmem:[#allocation8 + $0xc] sm:$0xf]
    %v484 = vld [vmem:[#allocation8 + $0x10] sm:$0xf]
    %v485 = vld [vmem:[#allocation8 + $0x14] sm:$0xf]
    %v486 = vld [vmem:[#allocation8 + $0x18] sm:$0xf]
    %v487 = vld [vmem:[#allocation8 + $0x1c] sm:$0xf]
    %v488 = vld [vmem:[#allocation8 + $0x20] sm:$0xf]
    %v489 = vld [vmem:[#allocation8 + $0x24] sm:$0xf]
    %v490 = vld [vmem:[#allocation8 + $0x28] sm:$0xf]
    %v491 = vld [vmem:[#allocation8 + $0x2c] sm:$0xf]
    %v492 = vld [vmem:[#allocation8 + $0x30] sm:$0xf]
    %v493 = vld [vmem:[#allocation8 + $0x34] sm:$0xf]
    %v494 = vld [vmem:[#allocation8 + $0x38] sm:$0xf]
    %v495 = vld [vmem:[#allocation8 + $0x3c] sm:$0xf]
    %v496 = vld [vmem:[#allocation8 + $0x40] sm:$0xf]
    %v497 = vld [vmem:[#allocation8 + $0x44] sm:$0xf]
    %v498 = vld [vmem:[#allocation8 + $0x48] sm:$0xf]
    %v499 = vld [vmem:[#allocation8 + $0x4c] sm:$0xf]
    %v500 = vld [vmem:[#allocation8 + $0x50] sm:$0xf]
    %v501 = vld [vmem:[#allocation8 + $0x54] sm:$0xf]
    %v502 = vld [vmem:[#allocation8 + $0x58] sm:$0xf]
    %v503 = vld [vmem:[#allocation8 + $0x5c] sm:$0xf]
    %v504 = vld [vmem:[#allocation8 + $0x60] sm:$0xf]
    %v505 = vld [vmem:[#allocation8 + $0x64] sm:$0xf]
    %v506 = vld [vmem:[#allocation8 + $0x68] sm:$0xf]
    %v507 = vld [vmem:[#allocation8 + $0x6c] sm:$0xf]
    %v508 = vld [vmem:[#allocation8 + $0x70] sm:$0xf]
    %v509 = vld [vmem:[#allocation8 + $0x74] sm:$0xf]
    %v510 = vld [vmem:[#allocation8 + $0x78] sm:$0xf]
    %v511 = vld [vmem:[#allocation8 + $0x7c] sm:$0xf]
    %v512 = vld [vmem:[%s5] sm:$0x1]
    %v514 = vlaneseq
    %v515 = vshrl.u32 %v514, 7
    %v516 = vsub.s32 0, %v515
    %v517 = vrot.slane %v512, %v516
    %v551 = vunpack.c.l.b16 %v480
    %v552 = vunpack.c.l.b16 %v481
    %v553 = vunpack.c.l.b16 %v482
    %v554 = vunpack.c.l.b16 %v483
    %v555 = vunpack.c.l.b16 %v484
    %v556 = vunpack.c.l.b16 %v485
    %v557 = vunpack.c.l.b16 %v486
    %v558 = vunpack.c.l.b16 %v487
    %v559 = vunpack.c.l.b16 %v488
    %v560 = vunpack.c.l.b16 %v489
    %v561 = vunpack.c.l.b16 %v490
    %v562 = vunpack.c.l.b16 %v491
    %v563 = vunpack.c.l.b16 %v492
    %v564 = vunpack.c.l.b16 %v493
    %v565 = vunpack.c.l.b16 %v494
    %v566 = vunpack.c.l.b16 %v495
    %v567 = vunpack.c.l.b16 %v496
    %v568 = vunpack.c.l.b16 %v497
    %v569 = vunpack.c.l.b16 %v498
    %v570 = vunpack.c.l.b16 %v499
    %v571 = vunpack.c.l.b16 %v500
    %v572 = vunpack.c.l.b16 %v501
    %v573 = vunpack.c.l.b16 %v502
    %v574 = vunpack.c.l.b16 %v503
    %v575 = vunpack.c.l.b16 %v504
    %v576 = vunpack.c.l.b16 %v505
    %v577 = vunpack.c.l.b16 %v506
    %v578 = vunpack.c.l.b16 %v507
    %v579 = vunpack.c.l.b16 %v508
    %v580 = vunpack.c.l.b16 %v509
    %v581 = vunpack.c.l.b16 %v510
    %v582 = vunpack.c.l.b16 %v511
    %v583 = vpack.c.b16 %v552, %v551
    %v584 = vpack.c.b16 %v554, %v553
    %v585 = vpack.c.b16 %v556, %v555
    %v586 = vpack.c.b16 %v558, %v557
    %v587 = vpack.c.b16 %v560, %v559
    %v588 = vpack.c.b16 %v562, %v561
    %v589 = vpack.c.b16 %v564, %v563
    %v590 = vpack.c.b16 %v566, %v565
    %v591 = vpack.c.b16 %v568, %v567
    %v592 = vpack.c.b16 %v570, %v569
    %v593 = vpack.c.b16 %v572, %v571
    %v594 = vpack.c.b16 %v574, %v573
    %v595 = vpack.c.b16 %v576, %v575
    %v596 = vpack.c.b16 %v578, %v577
    %v597 = vpack.c.b16 %v580, %v579
    %v598 = vpack.c.b16 %v582, %v581
    %615 = vmatprep.subr.bf16.mxu0 0
    %616 = vmatpush1.bf16.msra.mxu0 %v583
    %617 = vmatprep.subr.bf16.mxu0 0
    %618 = vmatpush1.bf16.msra.mxu0 %v584
    %619 = vmatprep.subr.bf16.mxu0 0
    %620 = vmatpush1.bf16.msra.mxu0 %v585
    %621 = vmatprep.subr.bf16.mxu0 0
    %622 = vmatpush1.bf16.msra.mxu0 %v586
    %623 = vmatprep.subr.bf16.mxu0 0
    %624 = vmatpush1.bf16.msra.mxu0 %v587
    %625 = vmatprep.subr.bf16.mxu0 0
    %626 = vmatpush1.bf16.msra.mxu0 %v588
    %627 = vmatprep.subr.bf16.mxu0 0
    %628 = vmatpush1.bf16.msra.mxu0 %v589
    %629 = vmatprep.subr.bf16.mxu0 0
    %630 = vmatpush1.bf16.msra.mxu0 %v590
    %631 = vmatprep.subr.bf16.mxu0 0
    %632 = vmatpush1.bf16.msra.mxu0 %v591
    %633 = vmatprep.subr.bf16.mxu0 0
    %634 = vmatpush1.bf16.msra.mxu0 %v592
    %635 = vmatprep.subr.bf16.mxu0 0
    %636 = vmatpush1.bf16.msra.mxu0 %v593
    %637 = vmatprep.subr.bf16.mxu0 0
    %638 = vmatpush1.bf16.msra.mxu0 %v594
    %639 = vmatprep.subr.bf16.mxu0 0
    %640 = vmatpush1.bf16.msra.mxu0 %v595
    %641 = vmatprep.subr.bf16.mxu0 0
    %642 = vmatpush1.bf16.msra.mxu0 %v596
    %643 = vmatprep.subr.bf16.mxu0 0
    %644 = vmatpush1.bf16.msra.mxu0 %v597
    %645 = vmatprep.subr.bf16.mxu0 0
    %646 = vmatpush1.bf16.msra.mxu0 %v598
    %647 = vmatprep.mubr.bf16.mxu0 %v479
    %648 = vmatmul.mubr.bf16.gmra.mrb[0].mxu0 %v478
    %v649 = vpop.f32.mrb[0].mxu0
    %v650 = vadd.f32 %v517, %v649
    %v651 = vpop.f32.mrb[0].mxu0
    %v652 = vpop.f32.mrb[0].mxu0
    %v653 = vpop.f32.mrb[0].mxu0
    %654 = vdwg.mxu0
    %v655 = vmax.f32 %v650, 0.0
    %v656 = vmul.f32 %v655, %v655
    %vm657 = vcmask 1041408
    %v658 = vsel %vm657, %v656, 0.0
    %659 = vadd.xlane.f32.xlu0 %v658
    %v660 = vpop.xlane.xlu0 %659
    %v661 = vmax.f32 %v660, 1e-24
    %v662 = vrsqrt.pop %v661
    %v663 = vmul.f32 %v655, %v662
    %664 = vst [vmem:[#allocation9] sm:$0x3] %v663
    // Predicated region
    $region38: #{tpu_custom_call.1} parent=1 // pred_check
      _
    $region39: #{tpu_custom_call.1} parent=1 // pred_check_branch
      %666 = sbr.rel (0) target = $region41
    $region40: #{tpu_custom_call.1} parent=1 // pred_region
      %s668 = ssub.s32 32, 32
      %669 = vsyncadd [#allocation5], %s668
      %s671 = sshll.u32 [#allocation9], 4
      %s672 = int_to_ptr.vmem [resolvable:$true] %s671
      %674 = dma.vmem_to_hbm [thread:$0]  %s672, 32, %s6, [#allocation5]
    $region41: #{tpu_custom_call.1} parent=1 // pred_fallthru
      _
    // Predicated region
    $region42: #{tpu_custom_call.1} parent=1 // pred_check
      _
    $region43: #{tpu_custom_call.1} parent=1 // pred_check_branch
      %676 = sbr.rel (0) target = $region45
    $region44: #{tpu_custom_call.1} parent=1 // pred_region
      %677 = dma.done [#allocation5], 32
    $region45: #{tpu_custom_call.1} parent=1 // pred_fallthru
      _
    %678 = vsyncpa [#allocation4], 1
    %679 = vsyncpa [#allocation7], 1
    %680 = vsyncpa [#allocation5], 1

</llo_original>
